<compile_context>
chip_gen: v7x
topology: tpu7x:2x2x1
jax: 0.10.0
libtpu: 0.0.40
codegen_flags: <defaults>
</compile_context>

<pallas_src>
import math
from functools import partial

import jax
import jax.numpy as jnp
from jax import lax
from jax.experimental import pallas as pl
from jax.experimental.pallas import tpu as pltpu


# ----------------------------- tiling helper --------------------------------
def _pick_tile(n_rows: int) -> int:
    """Largest multiple-of-8 row tile (<= 512) dividing n_rows, preferring a grid
    with >= 2 steps (so v7x's two TensorCores both get work); else full extent."""
    for ts in (512, 256, 128, 64, 32, 16, 8):
        if n_rows % ts == 0 and n_rows // ts >= 2:
            return ts
    for ts in (512, 256, 128, 64, 32, 16, 8):
        if n_rows % ts == 0:
            return ts
    return n_rows


# ----------------------------- Pallas kernel --------------------------------
def _embed_kernel(idx_ref, wt_ref, pos_ref, out_ref, *, scale, g, vpad):
    # idx_ref: (tr, G)       int32 -- G consecutive flattened tokens per row (VMEM)
    # wt_ref:  (G*Vpad, G*E) f32   -- block-diagonal zero-padded table (VMEM resident)
    # pos_ref: (tr, G*E)     f32   -- positional encodings packed to output layout
    # out_ref: (tr, G*E)           -- lane-dense output tile
    tr = idx_ref.shape[0]
    k = g * vpad

    ids = idx_ref[...]
    # OOV / negative ids -> sentinel k: matches no one-hot column -> zero row.
    # (Safer than clamping to the last vocab row; nn.Embedding would raise.)
    ids = jnp.where((ids >= 0) & (ids < vpad), ids, k)

    # Build the one-hot gather matrix on the VPU (G is a small static constant).
    col = lax.broadcasted_iota(jnp.int32, (tr, k), 1)
    onehot = jnp.zeros((tr, k), jnp.float32)
    for gi in range(g):
        onehot = onehot + (col == (ids[:, gi:gi + 1] + gi * vpad)).astype(jnp.float32)

    # One-hot gather on the MXU; exact in f32 (1.0 * row + zeros).
    emb = jnp.dot(onehot, wt_ref[...], preferred_element_type=jnp.float32)

    # Scale + positional add in f32 (v5e has no bf16 VPU); cast only at the store.
    out_ref[...] = (emb * scale + pos_ref[...]).astype(out_ref.dtype)


# ------------------------------- wrapper -------------------------------------
def embedding_forward(indices, emb_table, pos_enc, sqrt_d_embed,
                      out_dtype=jnp.float32):
    """indices: (N,S) int, emb_table: (V,E) f32, pos_enc: (L,E) f32 -> (N,S,E)."""
    N, S = indices.shape
    V, E = emb_table.shape
    L = pos_enc.shape[0]
    assert S <= L, "sequence longer than max_seq_len"
    T = N * S

    # Lane-packing factor: fold G consecutive tokens into the 128-lane axis so the
    # output / pos-enc tiles are lane-dense even when E < 128 (here E=32 -> G=4).
    if E <= 128 and 128 % E == 0:
        G = min(128 // E, 8)            # cap keeps the static one-hot loop short
    else:
        G = 1
    while T % G:                        # G is a power of two; ensure it divides T
        G //= 2

    R = T // G                          # grouped token rows
    EW = G * E                          # packed output width (128 when E | 128)
    Vpad = ((V + 127) // 128) * 128     # vocab padded to a lane multiple
    K = G * Vpad                        # one-hot contraction size

    # Zero-padded table, replicated block-diagonally so the G tokens of one row
    # are gathered by a single (tr,K) x (K,EW) MXU matmul.
    tab = jnp.zeros((Vpad, E), jnp.float32).at[:V, :].set(emb_table.astype(jnp.float32))
    if G == 1:
        wide = tab
    else:
        wide = jnp.zeros((K, EW), jnp.float32)
        for gi in range(G):
            wide = wide.at[gi * Vpad:(gi + 1) * Vpad, gi * E:(gi + 1) * E].set(tab)

    # Positional encodings for every flattened token, packed to the output layout.
    pos_flat = jnp.broadcast_to(pos_enc[None, :S, :].astype(jnp.float32),
                                (N, S, E)).reshape(R, EW)
    idx2 = indices.reshape(R, G).astype(jnp.int32)

    tr = _pick_tile(R)
    grid = (R // tr,)

    out_bytes = R * EW * jnp.dtype(out_dtype).itemsize
    kernel = pl.pallas_call(
        partial(_embed_kernel, scale=float(sqrt_d_embed), g=G, vpad=Vpad),
        grid=grid,
        in_specs=[
            pl.BlockSpec((tr, G), lambda i: (i, 0)),    # token ids: lane vector in VMEM
            pl.BlockSpec((K, EW), lambda i: (0, 0)),    # table: constant block, fetched once
            pl.BlockSpec((tr, EW), lambda i: (i, 0)),   # packed positional encodings
        ],
        out_specs=pl.BlockSpec((tr, EW), lambda i: (i, 0)),
        out_shape=jax.ShapeDtypeStruct((R, EW), out_dtype),
        compiler_params=pltpu.CompilerParams(
            dimension_semantics=("parallel",),          # no reduction axis
            vmem_limit_bytes=32 * 1024 * 1024,          # explicit (v7x scoped default)
        ),
        cost_estimate=pl.CostEstimate(
            flops=2 * R * K * EW,
            transcendentals=0,
            bytes_accessed=idx2.size * 4 + wide.size * 4 + pos_flat.size * 4 + out_bytes,
        ),
    )
    out_flat = kernel(idx2, wide, pos_flat)
    return out_flat.reshape(N, S, E)    # row-major layout identical: free reshape


# --------------------------- parameter / buffer setup -----------------------
def make_positional_encoding(d_embed, max_seq_len):
    # positional_encoding(pos, 2i)   = sin(pos / 10000**(2i/d_embed))
    # positional_encoding(pos, 2i+1) = cos(pos / 10000**(2i/d_embed))
    pos = jnp.arange(max_seq_len, dtype=jnp.float32)
    denom = jnp.exp(-jnp.arange(0, d_embed, 2, dtype=jnp.float32)
                    * math.log(10000.0) / d_embed)
    phase = pos[:, None] * denom[None, :]            # (max_seq_len, d_embed//2)
    enc = jnp.zeros((max_seq_len, d_embed), dtype=jnp.float32)
    enc = enc.at[:, 0::2].set(jnp.sin(phase))
    enc = enc.at[:, 1::2].set(jnp.cos(phase))
    return enc


def make_embedding_table(key, n_tokens, d_embed, unk_index):
    # nn.Embedding default init N(0, 1); padding_idx row zeroed
    w = jax.random.normal(key, (n_tokens, d_embed), dtype=jnp.float32)
    w = w.at[unk_index].set(0.0)
    return w


# ------------------------------- reference ----------------------------------
def reference_forward(indices, emb_table, pos_enc, sqrt_d_embed):
    src = emb_table[indices] * sqrt_d_embed            # (N, S, E)
    return src + pos_enc[None, : indices.shape[1]]     # dropout is identity in eval


# --------------------------------- main --------------------------------------
if __name__ == "__main__":
    # module hyperparameters (small, consistent with the forward semantics)
    d_embed = 32
    max_seq_len = 32
    n_tokens = 100
    unk_index = 1
    # TODO(synk): dropout is a no-op in eval mode; self.layer_norm is defined
    # in __init__ but never used in forward, so neither is implemented.

    N, S = 4, 16

    key = jax.random.PRNGKey(0)
    k_emb, k_idx = jax.random.split(key)

    emb_table = make_embedding_table(k_emb, n_tokens, d_embed, unk_index)
    pos_enc = make_positional_encoding(d_embed, max_seq_len)
    indices = jax.random.randint(k_idx, (N, S), 0, n_tokens, dtype=jnp.int32)

    sqrt_d_embed = math.sqrt(d_embed)

    out = embedding_forward(indices, emb_table, pos_enc, sqrt_d_embed)
    out = jax.block_until_ready(out)

    ref = reference_forward(indices, emb_table, pos_enc, sqrt_d_embed)
    assert out.shape == (N, S, d_embed)
    assert jnp.allclose(out, ref, atol=1e-5, rtol=1e-5), "mismatch vs reference"

    print("KERNEL_OK")
</pallas_src>

<mosaic_0001>
module attributes {stable_mosaic.version = 11 : i64} {
  func.func @_embed_kernel(%arg0: i32, %arg1: memref<8x4xi32, #tpu.memory_space<vmem>>, %arg2: memref<512x128xf32, #tpu.memory_space<vmem>>, %arg3: memref<8x128xf32, #tpu.memory_space<vmem>>, %arg4: memref<8x128xf32, #tpu.memory_space<vmem>>) attributes {dimension_semantics = [#tpu.dimension_semantics<parallel>], iteration_bounds = array<i64: 2>, scalar_prefetch = 0 : i64, scratch_operands = 0 : i64, tpu.core_type = #tpu.core_type<tc>, window_params = [{transform_indices = @transform_0, window_bounds = array<i64: 8, 4>}, {pipeline_mode = #tpu.pipeline_mode<synchronous>, transform_indices = @transform_1, window_bounds = array<i64: 512, 128>}, {transform_indices = @transform_2, window_bounds = array<i64: 8, 128>}, {transform_indices = @transform_3, window_bounds = array<i64: 8, 128>}]} {
    %c0 = arith.constant 0 : index
    %c0_0 = arith.constant 0 : index
    %0 = vector.load %arg1[%c0, %c0_0] : memref<8x4xi32, #tpu.memory_space<vmem>>, vector<8x4xi32>
    %c0_i32 = arith.constant 0 : i32
    %1 = vector.broadcast %c0_i32 : i32 to vector<8x4xi32>
    %2 = arith.cmpi sge, %0, %1 : vector<8x4xi32>
    %c128_i32 = arith.constant 128 : i32
    %3 = vector.broadcast %c128_i32 : i32 to vector<8x4xi32>
    %4 = arith.cmpi slt, %0, %3 : vector<8x4xi32>
    %5 = arith.andi %2, %4 : vector<8x4xi1>
    %c512_i32 = arith.constant 512 : i32
    %6 = vector.broadcast %c512_i32 : i32 to vector<8x4xi32>
    %7 = arith.select %5, %0, %6 : vector<8x4xi1>, vector<8x4xi32>
    %8 = tpu.iota {dimensions = array<i32: 1>} : vector<8x512xi32>
    %cst = arith.constant 0.000000e+00 : f32
    %9 = vector.broadcast %cst : f32 to vector<8x512xf32>
    %10 = vector.extract_strided_slice %7 {offsets = [0, 0], sizes = [8, 1], strides = [1, 1]} : vector<8x4xi32> to vector<8x1xi32>
    %c0_i32_1 = arith.constant 0 : i32
    %11 = vector.broadcast %c0_i32_1 : i32 to vector<8x1xi32>
    %12 = arith.addi %10, %11 : vector<8x1xi32>
    %13 = vector.broadcast %12 : vector<8x1xi32> to vector<8x512xi32>
    %14 = arith.cmpi eq, %8, %13 : vector<8x512xi32>
    %15 = arith.extui %14 : vector<8x512xi1> to vector<8x512xi32>
    %16 = arith.sitofp %15 : vector<8x512xi32> to vector<8x512xf32>
    %17 = arith.addf %9, %16 : vector<8x512xf32>
    %18 = vector.extract_strided_slice %7 {offsets = [0, 1], sizes = [8, 1], strides = [1, 1]} : vector<8x4xi32> to vector<8x1xi32>
    %c128_i32_2 = arith.constant 128 : i32
    %19 = vector.broadcast %c128_i32_2 : i32 to vector<8x1xi32>
    %20 = arith.addi %18, %19 : vector<8x1xi32>
    %21 = vector.broadcast %20 : vector<8x1xi32> to vector<8x512xi32>
    %22 = arith.cmpi eq, %8, %21 : vector<8x512xi32>
    %23 = arith.extui %22 : vector<8x512xi1> to vector<8x512xi32>
    %24 = arith.sitofp %23 : vector<8x512xi32> to vector<8x512xf32>
    %25 = arith.addf %17, %24 : vector<8x512xf32>
    %26 = vector.extract_strided_slice %7 {offsets = [0, 2], sizes = [8, 1], strides = [1, 1]} : vector<8x4xi32> to vector<8x1xi32>
    %c256_i32 = arith.constant 256 : i32
    %27 = vector.broadcast %c256_i32 : i32 to vector<8x1xi32>
    %28 = arith.addi %26, %27 : vector<8x1xi32>
    %29 = vector.broadcast %28 : vector<8x1xi32> to vector<8x512xi32>
    %30 = arith.cmpi eq, %8, %29 : vector<8x512xi32>
    %31 = arith.extui %30 : vector<8x512xi1> to vector<8x512xi32>
    %32 = arith.sitofp %31 : vector<8x512xi32> to vector<8x512xf32>
    %33 = arith.addf %25, %32 : vector<8x512xf32>
    %34 = vector.extract_strided_slice %7 {offsets = [0, 3], sizes = [8, 1], strides = [1, 1]} : vector<8x4xi32> to vector<8x1xi32>
    %c384_i32 = arith.constant 384 : i32
    %35 = vector.broadcast %c384_i32 : i32 to vector<8x1xi32>
    %36 = arith.addi %34, %35 : vector<8x1xi32>
    %37 = vector.broadcast %36 : vector<8x1xi32> to vector<8x512xi32>
    %38 = arith.cmpi eq, %8, %37 : vector<8x512xi32>
    %39 = arith.extui %38 : vector<8x512xi1> to vector<8x512xi32>
    %40 = arith.sitofp %39 : vector<8x512xi32> to vector<8x512xf32>
    %41 = arith.addf %33, %40 : vector<8x512xf32>
    %c0_3 = arith.constant 0 : index
    %c0_4 = arith.constant 0 : index
    %42 = vector.load %arg2[%c0_3, %c0_4] : memref<512x128xf32, #tpu.memory_space<vmem>>, vector<512x128xf32>
    %cst_5 = arith.constant dense<0.000000e+00> : vector<8x128xf32>
    %43 = tpu.matmul %41, %42, %cst_5 {dimension_numbers = #tpu.dot_dimension_numbers<[1], [0], [0], [1], [0, 0, 1, 1], [], []>} : vector<8x512xf32>, vector<512x128xf32>, vector<8x128xf32> -> vector<8x128xf32>
    %cst_6 = arith.constant 5.65685415 : f32
    %44 = vector.broadcast %cst_6 : f32 to vector<8x128xf32>
    %45 = arith.mulf %43, %44 : vector<8x128xf32>
    %c0_7 = arith.constant 0 : index
    %c0_8 = arith.constant 0 : index
    %46 = vector.load %arg3[%c0_7, %c0_8] : memref<8x128xf32, #tpu.memory_space<vmem>>, vector<8x128xf32>
    %47 = arith.addf %45, %46 : vector<8x128xf32>
    %c0_9 = arith.constant 0 : index
    %c0_10 = arith.constant 0 : index
    %48 = vector.load %arg4[%c0_9, %c0_10] : memref<8x128xf32, #tpu.memory_space<vmem>>, vector<8x128xf32>
    tpu.vector_store %arg4[%c0_9, %c0_10], %47 {strides = array<i32>} : memref<8x128xf32, #tpu.memory_space<vmem>>, vector<8x128xf32>,
    return
  }
  func.func @transform_0(%arg0: i32) -> (i32, i32) {
    %c0_i32 = arith.constant 0 : i32
    %c0_i32_0 = arith.constant 0 : i32
    return %arg0, %c0_i32 : i32, i32
  }
  func.func @transform_1(%arg0: i32) -> (i32, i32) {
    %c0_i32 = arith.constant 0 : i32
    %c0_i32_0 = arith.constant 0 : i32
    %c0_i32_1 = arith.constant 0 : i32
    return %c0_i32, %c0_i32_0 : i32, i32
  }
  func.func @transform_2(%arg0: i32) -> (i32, i32) {
    %c0_i32 = arith.constant 0 : i32
    %c0_i32_0 = arith.constant 0 : i32
    return %arg0, %c0_i32 : i32, i32
  }
  func.func @transform_3(%arg0: i32) -> (i32, i32) {
    %c0_i32 = arith.constant 0 : i32
    %c0_i32_0 = arith.constant 0 : i32
    return %arg0, %c0_i32 : i32, i32
  }
}

</mosaic_0001>

<llo_original>
// kernel: tpu_custom_call.1
$region0: #{tpu_custom_call.1}
  #allocation0 [shape = 'u32[]', space=smem, size = 0x4, offset = 0x4, fixed_abs, tag = 'smem constant byte address 0x4 - core index']
  #allocation1 [shape = 'u32[144,128]{1,0:T(1,128)}', space=vmem, size = 0x12000, scoped, tag = 'internal scratch']
  %s0 = inlined_call_operand.vmem [shape: s32[16,4], index: 0, kind: input, shape index: {}]
  %s1 = inlined_call_operand.hbm [shape: f32[512,128], index: 1, kind: input, shape index: {}]
  %s2 = inlined_call_operand.vmem [shape: f32[16,128], index: 2, kind: input, shape index: {}]
  %s3 = inlined_call_operand.hbm [shape: f32[16,128], index: 3, kind: output, shape index: {}]
  %s4 = sld [smem:[#allocation0]]
  $region49: #{tpu_custom_call.1} parent=0
    _
  %s6 = ssub.s32 1, %s4
  %s7 = scalar_select 0, %s6, %s4
  $region1: #{tpu_custom_call.1} parent=0
    #allocation2 [shape = 'u8[262144]{0}', space=vmem, size = 0x40000, scoped, tag = 'input window, operand 1, single buffered']
    #allocation3 [shape = 's32[2]{0}', space=sflag, size = 0x8, scoped, tag = 'scoped memory for tpu_custom_call.1']
    #allocation4 [shape = 's32[2]{0}', space=sflag, size = 0x8, scoped, tag = 'scoped memory for tpu_custom_call.1']
    #allocation5 [shape = 'u8[8192]{0}', space=vmem, size = 0x2000, scoped, tag = 'output window, operand 0']
    %8 = vsyncpa [#allocation3], 0
    %9 = vsyncpa [#allocation4], 0
    %s10 = scalar_lea.sflag [#allocation4], 1
    %11 = vsyncpa %s10, 0
    loop: start=0, step=1, limit=4
    $region2: #{tpu_custom_call.1} parent=1 // loop_pre_header
      _
    $region3: #{tpu_custom_call.1} parent=1 // loop_header
      %s13 = sphi 0, %s17
      %p14 = scmp.ge.s32.totalorder %s13, 4
      %s23 = sphi 0, %s25
      %s26 = sphi 0, %s23
      %s27 = sphi 0, %s26
      %s43 = sphi 0, %s27
      %s47 = sphi 0, %s47
      %s49 = sphi 0, %s47
      %s50 = sphi 0, %s49
      %s64 = sphi 0, %s50
      %s70 = sphi 0, %s72
      %s73 = sphi 0, %s70
      %s74 = sphi 0, %s73
      %s90 = sphi 0, %s74
      %s96 = sphi 0, %s98
      %s99 = sphi 0, %s96
      %s100 = sphi 0, %s99
      %s116 = sphi 0, %s100
    $region4: #{tpu_custom_call.1} parent=1 // loop_header_branch
      %16 = sbr.rel (%p14) target = $region8
    $region5: #{tpu_custom_call.1} parent=1 // loop_body
      %s18 = ssub.s32 %s13, 1
      %s19 = ssub.s32 %s13, 2
      %s20 = sadd.s32 %s13, 1
      %s21 = ssub.s32 %s13, %s20
      %p22 = scmp.eq.s32.totalorder %s21, 0
      %s24 = sadd.s32 %s23, 1
      %s25 = scalar_select %p22, %s23, %s24
      %p28 = pneg %p22
      %p29 = scmp.eq.s32.totalorder %s13, 1
      %p30 = por %p28, %p29
      %p31 = scmp.ne.s32.totalorder %s23, %s26
      %p32 = scmp.eq.s32.totalorder %s13, 0
      %p33 = por %p31, %p32
      %p34 = scmp.ne.s32.totalorder %s23, %s26
      %p35 = scmp.eq.s32.totalorder %s18, 1
      %p36 = por %p34, %p35
      %p37 = scmp.ne.s32.totalorder %s26, %s27
      %p38 = scmp.eq.s32.totalorder %s18, 0
      %p39 = por %p37, %p38
      %p40 = scmp.ne.s32.totalorder %s26, %s27
      %p41 = scmp.eq.s32.totalorder %s19, 1
      %p42 = por %p40, %p41
      %p44 = scmp.ne.s32.totalorder %s27, %s43
      %p45 = scmp.eq.s32.totalorder %s19, 0
      %p46 = por %p44, %p45
      %s48 = sadd.s32 %s47, 1
      %p51 = scmp.eq.s32.totalorder %s13, 1
      %p52 = scmp.ne.s32.totalorder %s47, %s49
      %p53 = scmp.eq.s32.totalorder %s13, 0
      %p54 = por %p52, %p53
      %p55 = scmp.ne.s32.totalorder %s47, %s49
      %p56 = scmp.eq.s32.totalorder %s18, 1
      %p57 = por %p55, %p56
      %p58 = scmp.ne.s32.totalorder %s49, %s50
      %p59 = scmp.eq.s32.totalorder %s18, 0
      %p60 = por %p58, %p59
      %p61 = scmp.ne.s32.totalorder %s49, %s50
      %p62 = scmp.eq.s32.totalorder %s19, 1
      %p63 = por %p61, %p62
      %p65 = scmp.ne.s32.totalorder %s50, %s64
      %p66 = scmp.eq.s32.totalorder %s19, 0
      %p67 = por %p65, %p66
      %s68 = ssub.s32 %s13, %s20
      %p69 = scmp.eq.s32.totalorder %s68, 0
      %s71 = sadd.s32 %s70, 1
      %s72 = scalar_select %p69, %s70, %s71
      %p75 = pneg %p69
      %p76 = scmp.eq.s32.totalorder %s13, 1
      %p77 = por %p75, %p76
      %p78 = scmp.ne.s32.totalorder %s70, %s73
      %p79 = scmp.eq.s32.totalorder %s13, 0
      %p80 = por %p78, %p79
      %p81 = scmp.ne.s32.totalorder %s70, %s73
      %p82 = scmp.eq.s32.totalorder %s18, 1
      %p83 = por %p81, %p82
      %p84 = scmp.ne.s32.totalorder %s73, %s74
      %p85 = scmp.eq.s32.totalorder %s18, 0
      %p86 = por %p84, %p85
      %p87 = scmp.ne.s32.totalorder %s73, %s74
      %p88 = scmp.eq.s32.totalorder %s19, 1
      %p89 = por %p87, %p88
      %p91 = scmp.ne.s32.totalorder %s74, %s90
      %p92 = scmp.eq.s32.totalorder %s19, 0
      %p93 = por %p91, %p92
      %s94 = ssub.s32 %s13, %s20
      %p95 = scmp.eq.s32.totalorder %s94, 0
      %s97 = sadd.s32 %s96, 1
      %s98 = scalar_select %p95, %s96, %s97
      %p101 = pneg %p95
      %p102 = scmp.eq.s32.totalorder %s13, 1
      %p103 = por %p101, %p102
      %p104 = scmp.ne.s32.totalorder %s96, %s99
      %p105 = scmp.eq.s32.totalorder %s13, 0
      %p106 = por %p104, %p105
      %p107 = scmp.ne.s32.totalorder %s96, %s99
      %p108 = scmp.eq.s32.totalorder %s18, 1
      %p109 = por %p107, %p108
      %p110 = scmp.ne.s32.totalorder %s99, %s100
      %p111 = scmp.eq.s32.totalorder %s18, 0
      %p112 = por %p110, %p111
      %p113 = scmp.ne.s32.totalorder %s99, %s100
      %p114 = scmp.eq.s32.totalorder %s19, 1
      %p115 = por %p113, %p114
      %p117 = scmp.ne.s32.totalorder %s100, %s116
      %p118 = scmp.eq.s32.totalorder %s19, 0
      %p119 = por %p117, %p118
      %p120 = scmp.le.s32.totalorder 1, %s13
      %p121 = scmp.lt.s32.totalorder %s13, 3
      %p122 = pnand %p120, %p121
      %p123 = pneg %p122
      // Predicated region
      $region9: #{tpu_custom_call.1} parent=5 // pred_check
        _
      $region10: #{tpu_custom_call.1} parent=5 // pred_check_branch
        %125 = sbr.rel (%p122) target = $region12
      $region11: #{tpu_custom_call.1} parent=5 // pred_region
        %s126 = ssub.s32 %s13, 1
        // Predicated region
        $region13: #{tpu_custom_call.1} parent=11 // pred_check
          %p127 = pneg %p60
        $region14: #{tpu_custom_call.1} parent=11 // pred_check_branch
          %129 = sbr.rel (%p127) target = $region16
        $region15: #{tpu_custom_call.1} parent=11 // pred_region
          %s131 = ssub.s32 8192, 8192
          %132 = vsyncadd [#allocation3], %s131
          %s133 = sshll.u32 [#allocation2], 4
          %s134 = int_to_ptr.vmem [resolvable:$true] %s133
          %139 = dma.hbm_to_vmem [thread:$0]  %s1, 8192, %s134, [#allocation3], 128, 128, 8
        $region16: #{tpu_custom_call.1} parent=11 // pred_fallthru
          _
      $region12: #{tpu_custom_call.1} parent=5 // pred_fallthru
        _
      %p140 = scmp.lt.s32.totalorder %s13, 2
      // Predicated region
      $region17: #{tpu_custom_call.1} parent=5 // pred_check
        %p141 = pneg %p140
      $region18: #{tpu_custom_call.1} parent=5 // pred_check_branch
        %143 = sbr.rel (%p141) target = $region20
      $region19: #{tpu_custom_call.1} parent=5 // pred_region
        // Predicated region
        $region21: #{tpu_custom_call.1} parent=19 // pred_check
          %p144 = pneg %p33
        $region22: #{tpu_custom_call.1} parent=19 // pred_check_branch
          %146 = sbr.rel (%p144) target = $region24
        $region23: #{tpu_custom_call.1} parent=19 // pred_region
          %p147 = scmp.lt.s32.totalorder %s13, 1
          %s148 = scalar_select %p147, %s13, 1
          %s149 = smul.addr %s148, 8
          %s150 = scalar_lea.vmem %s0, %s149
        $region24: #{tpu_custom_call.1} parent=19 // pred_fallthru
          _
        // Predicated region
        $region25: #{tpu_custom_call.1} parent=19 // pred_check
          %p151 = pneg %p80
        $region26: #{tpu_custom_call.1} parent=19 // pred_check_branch
          %153 = sbr.rel (%p151) target = $region28
        $region27: #{tpu_custom_call.1} parent=19 // pred_region
          %p154 = scmp.lt.s32.totalorder %s13, 1
          %s155 = scalar_select %p154, %s13, 1
          %s156 = smul.addr %s155, 8
          %s157 = scalar_lea.vmem %s2, %s156
        $region28: #{tpu_custom_call.1} parent=19 // pred_fallthru
          _
      $region20: #{tpu_custom_call.1} parent=5 // pred_fallthru
        _
      %p158 = scmp.le.s32.totalorder 1, %s13
      %p159 = scmp.lt.s32.totalorder %s13, 3
      %p160 = pnand %p158, %p159
      %p161 = pneg %p160
      // Predicated region
      $region29: #{tpu_custom_call.1} parent=5 // pred_check
        _
      $region30: #{tpu_custom_call.1} parent=5 // pred_check_branch
        %163 = sbr.rel (%p160) target = $region32
      $region31: #{tpu_custom_call.1} parent=5 // pred_region
        %s164 = ssub.s32 %s13, 1
        // Predicated region
        $region33: #{tpu_custom_call.1} parent=31 // pred_check
          %p165 = pneg %p60
        $region34: #{tpu_custom_call.1} parent=31 // pred_check_branch
          %167 = sbr.rel (%p165) target = $region36
        $region35: #{tpu_custom_call.1} parent=31 // pred_region
          %168 = dma.done [#allocation3], 8192
        $region36: #{tpu_custom_call.1} parent=31 // pred_fallthru
          _
        %p169 = scmp.lt.s32.totalorder %s18, 1
        %s170 = scalar_select %p169, %s18, 1
        %s171 = smul.addr %s170, 8
        %s172 = scalar_lea.vmem %s0, %s171
        %p173 = pneg %p39
        %p174 = pneg %p36
        %p175 = pneg %p60
        %p176 = pneg %p57
        %p177 = scmp.lt.s32.totalorder %s18, 1
        %s178 = scalar_select %p177, %s18, 1
        %s179 = smul.addr %s178, 8
        %s180 = scalar_lea.vmem %s2, %s179
        %p181 = pneg %p86
        %p182 = pneg %p83
        %p183 = pneg %p112
        %p184 = pneg %p109
        %s185 = sand.u32 %s99, 1
        %s186 = scalar_lea.sflag [#allocation4], %s185
        %s187 = sand.u32 %s99, 1
        %s188 = smul.addr %s187, 8
        %s189 = scalar_lea.vmem [#allocation5], %s188
        %p190 = scmp.lt.s32.totalorder %s18, 1
        %s191 = scalar_select %p190, %s18, 1
        %s192 = smul.addr %s191, 8
        %s193 = scalar_lea.vmem %s0, %s192
        %p194 = scmp.lt.s32.totalorder %s18, 1
        %s195 = scalar_select %p194, %s18, 1
        %s196 = smul.addr %s195, 8
        %s197 = scalar_lea.vmem %s2, %s196
        %v198 = vld [vmem:[%s193] sm:$0xff]
        %vm199 = vcmp.ge.s32.totalorder %v198, 0
        %vm200 = vcmp.lt.s32.totalorder %v198, 128
        %vm201 = vmand %vm199, %vm200
        %v202 = vsel %vm201, %v198, 512
        %v203 = vlaneseq
        %v204 = vand.u32 %v203, 127
        %v205 = vadd.s32 %v204, 128
        %v206 = vadd.s32 %v204, 256
        %v207 = vadd.s32 %v204, 384
        %208 = vset.pattern.permute.xlu0 0
        %209 = vperm.xlu0 %208, %v202
        %v210 = vpop.permute.xlu0 %209
        %vm211 = vcmp.eq.s32.totalorder %v204, %v210
        %vm212 = vcmp.eq.s32.totalorder %v205, %v210
        %vm213 = vcmp.eq.s32.totalorder %v206, %v210
        %vm214 = vcmp.eq.s32.totalorder %v207, %v210
        %v215 = vsel %vm211, 1, 0
        %v216 = vsel %vm212, 1, 0
        %v217 = vsel %vm213, 1, 0
        %v218 = vsel %vm214, 1, 0
        %v219 = vcvt.s32.f32 %v215
        %v220 = vcvt.s32.f32 %v216
        %v221 = vcvt.s32.f32 %v217
        %v222 = vcvt.s32.f32 %v218
        %v223 = vadd.f32 %v219, 0.0
        %v224 = vadd.f32 %v220, 0.0
        %v225 = vadd.f32 %v221, 0.0
        %v226 = vadd.f32 %v222, 0.0
        %v227 = vadd.s32 %v202, 128
        %228 = vset.pattern.permute.xlu0 1
        %229 = vperm.xlu0 %228, %v227
        %v230 = vpop.permute.xlu0 %229
        %vm231 = vcmp.eq.s32.totalorder %v204, %v230
        %vm232 = vcmp.eq.s32.totalorder %v205, %v230
        %vm233 = vcmp.eq.s32.totalorder %v206, %v230
        %vm234 = vcmp.eq.s32.totalorder %v207, %v230
        %v235 = vsel %vm231, 1, 0
        %v236 = vsel %vm232, 1, 0
        %v237 = vsel %vm233, 1, 0
        %v238 = vsel %vm234, 1, 0
        %v239 = vcvt.s32.f32 %v235
        %v240 = vcvt.s32.f32 %v236
        %v241 = vcvt.s32.f32 %v237
        %v242 = vcvt.s32.f32 %v238
        %v243 = vadd.f32 %v223, %v239
        %v244 = vadd.f32 %v224, %v240
        %v245 = vadd.f32 %v225, %v241
        %v246 = vadd.f32 %v226, %v242
        %v247 = vadd.s32 %v202, 256
        %248 = vset.pattern.permute.xlu0 2
        %249 = vperm.xlu0 %248, %v247
        %v250 = vpop.permute.xlu0 %249
        %vm251 = vcmp.eq.s32.totalorder %v204, %v250
        %vm252 = vcmp.eq.s32.totalorder %v205, %v250
        %vm253 = vcmp.eq.s32.totalorder %v206, %v250
        %vm254 = vcmp.eq.s32.totalorder %v207, %v250
        %v255 = vsel %vm251, 1, 0
        %v256 = vsel %vm252, 1, 0
        %v257 = vsel %vm253, 1, 0
        %v258 = vsel %vm254, 1, 0
        %v259 = vcvt.s32.f32 %v255
        %v260 = vcvt.s32.f32 %v256
        %v261 = vcvt.s32.f32 %v257
        %v262 = vcvt.s32.f32 %v258
        %v263 = vadd.f32 %v243, %v259
        %v264 = vadd.f32 %v244, %v260
        %v265 = vadd.f32 %v245, %v261
        %v266 = vadd.f32 %v246, %v262
        %v267 = vadd.s32 %v202, 384
        %268 = vset.pattern.permute.xlu0 3
        %269 = vperm.xlu0 %268, %v267
        %v270 = vpop.permute.xlu0 %269
        %vm271 = vcmp.eq.s32.totalorder %v204, %v270
        %vm272 = vcmp.eq.s32.totalorder %v205, %v270
        %vm273 = vcmp.eq.s32.totalorder %v206, %v270
        %vm274 = vcmp.eq.s32.totalorder %v207, %v270
        %v275 = vsel %vm271, 1, 0
        %v276 = vsel %vm272, 1, 0
        %v277 = vsel %vm273, 1, 0
        %v278 = vsel %vm274, 1, 0
        %v279 = vcvt.s32.f32 %v275
        %v280 = vcvt.s32.f32 %v276
        %v281 = vcvt.s32.f32 %v277
        %v282 = vcvt.s32.f32 %v278
        %v283 = vadd.f32 %v263, %v279
        %v284 = vadd.f32 %v264, %v280
        %v285 = vadd.f32 %v265, %v281
        %v286 = vadd.f32 %v266, %v282
        %v287 = vld [vmem:[#allocation2] sm:$0xff]
        %v288 = vld [vmem:[#allocation2 + $0x8] sm:$0xff]
        %v289 = vld [vmem:[#allocation2 + $0x10] sm:$0xff]
        %v290 = vld [vmem:[#allocation2 + $0x18] sm:$0xff]
        %v291 = vld [vmem:[#allocation2 + $0x20] sm:$0xff]
        %v292 = vld [vmem:[#allocation2 + $0x28] sm:$0xff]
        %v293 = vld [vmem:[#allocation2 + $0x30] sm:$0xff]
        %v294 = vld [vmem:[#allocation2 + $0x38] sm:$0xff]
        %v295 = vld [vmem:[#allocation2 + $0x40] sm:$0xff]
        %v296 = vld [vmem:[#allocation2 + $0x48] sm:$0xff]
        %v297 = vld [vmem:[#allocation2 + $0x50] sm:$0xff]
        %v298 = vld [vmem:[#allocation2 + $0x58] sm:$0xff]
        %v299 = vld [vmem:[#allocation2 + $0x60] sm:$0xff]
        %v300 = vld [vmem:[#allocation2 + $0x68] sm:$0xff]
        %v301 = vld [vmem:[#allocation2 + $0x70] sm:$0xff]
        %v302 = vld [vmem:[#allocation2 + $0x78] sm:$0xff]
        %v303 = vld [vmem:[#allocation2 + $0x80] sm:$0xff]
        %v304 = vld [vmem:[#allocation2 + $0x88] sm:$0xff]
        %v305 = vld [vmem:[#allocation2 + $0x90] sm:$0xff]
        %v306 = vld [vmem:[#allocation2 + $0x98] sm:$0xff]
        %v307 = vld [vmem:[#allocation2 + $0xa0] sm:$0xff]
        %v308 = vld [vmem:[#allocation2 + $0xa8] sm:$0xff]
        %v309 = vld [vmem:[#allocation2 + $0xb0] sm:$0xff]
        %v310 = vld [vmem:[#allocation2 + $0xb8] sm:$0xff]
        %v311 = vld [vmem:[#allocation2 + $0xc0] sm:$0xff]
        %v312 = vld [vmem:[#allocation2 + $0xc8] sm:$0xff]
        %v313 = vld [vmem:[#allocation2 + $0xd0] sm:$0xff]
        %v314 = vld [vmem:[#allocation2 + $0xd8] sm:$0xff]
        %v315 = vld [vmem:[#allocation2 + $0xe0] sm:$0xff]
        %v316 = vld [vmem:[#allocation2 + $0xe8] sm:$0xff]
        %v317 = vld [vmem:[#allocation2 + $0xf0] sm:$0xff]
        %v318 = vld [vmem:[#allocation2 + $0xf8] sm:$0xff]
        %v319 = vld [vmem:[#allocation2 + $0x100] sm:$0xff]
        %v320 = vld [vmem:[#allocation2 + $0x108] sm:$0xff]
        %v321 = vld [vmem:[#allocation2 + $0x110] sm:$0xff]
        %v322 = vld [vmem:[#allocation2 + $0x118] sm:$0xff]
        %v323 = vld [vmem:[#allocation2 + $0x120] sm:$0xff]
        %v324 = vld [vmem:[#allocation2 + $0x128] sm:$0xff]
        %v325 = vld [vmem:[#allocation2 + $0x130] sm:$0xff]
        %v326 = vld [vmem:[#allocation2 + $0x138] sm:$0xff]
        %v327 = vld [vmem:[#allocation2 + $0x140] sm:$0xff]
        %v328 = vld [vmem:[#allocation2 + $0x148] sm:$0xff]
        %v329 = vld [vmem:[#allocation2 + $0x150] sm:$0xff]
        %v330 = vld [vmem:[#allocation2 + $0x158] sm:$0xff]
        %v331 = vld [vmem:[#allocation2 + $0x160] sm:$0xff]
        %v332 = vld [vmem:[#allocation2 + $0x168] sm:$0xff]
        %v333 = vld [vmem:[#allocation2 + $0x170] sm:$0xff]
        %v334 = vld [vmem:[#allocation2 + $0x178] sm:$0xff]
        %v335 = vld [vmem:[#allocation2 + $0x180] sm:$0xff]
        %v336 = vld [vmem:[#allocation2 + $0x188] sm:$0xff]
        %v337 = vld [vmem:[#allocation2 + $0x190] sm:$0xff]
        %v338 = vld [vmem:[#allocation2 + $0x198] sm:$0xff]
        %v339 = vld [vmem:[#allocation2 + $0x1a0] sm:$0xff]
        %v340 = vld [vmem:[#allocation2 + $0x1a8] sm:$0xff]
        %v341 = vld [vmem:[#allocation2 + $0x1b0] sm:$0xff]
        %v342 = vld [vmem:[#allocation2 + $0x1b8] sm:$0xff]
        %v343 = vld [vmem:[#allocation2 + $0x1c0] sm:$0xff]
        %v344 = vld [vmem:[#allocation2 + $0x1c8] sm:$0xff]
        %v345 = vld [vmem:[#allocation2 + $0x1d0] sm:$0xff]
        %v346 = vld [vmem:[#allocation2 + $0x1d8] sm:$0xff]
        %v347 = vld [vmem:[#allocation2 + $0x1e0] sm:$0xff]
        %v348 = vld [vmem:[#allocation2 + $0x1e8] sm:$0xff]
        %v349 = vld [vmem:[#allocation2 + $0x1f0] sm:$0xff]
        %v350 = vld [vmem:[#allocation2 + $0x1f8] sm:$0xff]
        %351 = vmatprep.subr.mxu0 0.0
        %352 = vmatpush1.msra.mxu0 %v287
        %353 = vmatprep.subr.mxu0 0.0
        %354 = vmatpush1.msra.mxu0 %v288
        %355 = vmatprep.subr.mxu0 0.0
        %356 = vmatpush1.msra.mxu0 %v289
        %357 = vmatprep.subr.mxu0 0.0
        %358 = vmatpush1.msra.mxu0 %v290
        %359 = vmatprep.subr.mxu0 0.0
        %360 = vmatpush1.msra.mxu0 %v291
        %361 = vmatprep.subr.mxu0 0.0
        %362 = vmatpush1.msra.mxu0 %v292
        %363 = vmatprep.subr.mxu0 0.0
        %364 = vmatpush1.msra.mxu0 %v293
        %365 = vmatprep.subr.mxu0 0.0
        %366 = vmatpush1.msra.mxu0 %v294
        %367 = vmatprep.subr.mxu0 0.0
        %368 = vmatpush1.msra.mxu0 %v295
        %369 = vmatprep.subr.mxu0 0.0
        %370 = vmatpush1.msra.mxu0 %v296
        %371 = vmatprep.subr.mxu0 0.0
        %372 = vmatpush1.msra.mxu0 %v297
        %373 = vmatprep.subr.mxu0 0.0
        %374 = vmatpush1.msra.mxu0 %v298
        %375 = vmatprep.subr.mxu0 0.0
        %376 = vmatpush1.msra.mxu0 %v299
        %377 = vmatprep.subr.mxu0 0.0
        %378 = vmatpush1.msra.mxu0 %v300
        %379 = vmatprep.subr.mxu0 0.0
        %380 = vmatpush1.msra.mxu0 %v301
        %381 = vmatprep.subr.mxu0 0.0
        %382 = vmatpush1.msra.mxu0 %v302
        %383 = vmatprep.subr.mxu0 0.0
        %384 = vmatpush1.msra.mxu0 %v303
        %385 = vmatprep.subr.mxu0 0.0
        %386 = vmatpush1.msra.mxu0 %v304
        %387 = vmatprep.subr.mxu0 0.0
        %388 = vmatpush1.msra.mxu0 %v305
        %389 = vmatprep.subr.mxu0 0.0
        %390 = vmatpush1.msra.mxu0 %v306
        %391 = vmatprep.subr.mxu0 0.0
        %392 = vmatpush1.msra.mxu0 %v307
        %393 = vmatprep.subr.mxu0 0.0
        %394 = vmatpush1.msra.mxu0 %v308
        %395 = vmatprep.subr.mxu0 0.0
        %396 = vmatpush1.msra.mxu0 %v309
        %397 = vmatprep.subr.mxu0 0.0
        %398 = vmatpush1.msra.mxu0 %v310
        %399 = vmatprep.subr.mxu0 0.0
        %400 = vmatpush1.msra.mxu0 %v311
        %401 = vmatprep.subr.mxu0 0.0
        %402 = vmatpush1.msra.mxu0 %v312
        %403 = vmatprep.subr.mxu0 0.0
        %404 = vmatpush1.msra.mxu0 %v313
        %405 = vmatprep.subr.mxu0 0.0
        %406 = vmatpush1.msra.mxu0 %v314
        %407 = vmatprep.subr.mxu0 0.0
        %408 = vmatpush1.msra.mxu0 %v315
        %409 = vmatprep.subr.mxu0 0.0
        %410 = vmatpush1.msra.mxu0 %v316
        %411 = vmatprep.subr.mxu0 0.0
        %412 = vmatpush1.msra.mxu0 %v317
        %413 = vmatprep.subr.mxu0 0.0
        %414 = vmatpush1.msra.mxu0 %v318
        %415 = vmatprep.mubr.f32.mxu0 %v284
        %416 = vmatmul.mubr.f32.gmra.mrb[0].mxu0 %v283
        %v417 = vpop.f32.mrb[0].mxu0
        %v418 = vadd.f32 0.0, %v417
        %v419 = vpop.f32.mrb[0].mxu0
        %420 = vdwg.mxu0
        %421 = vmatprep.subr.mxu0 0.0
        %422 = vmatpush1.msra.mxu0 %v319
        %423 = vmatprep.subr.mxu0 0.0
        %424 = vmatpush1.msra.mxu0 %v320
        %425 = vmatprep.subr.mxu0 0.0
        %426 = vmatpush1.msra.mxu0 %v321
        %427 = vmatprep.subr.mxu0 0.0
        %428 = vmatpush1.msra.mxu0 %v322
        %429 = vmatprep.subr.mxu0 0.0
        %430 = vmatpush1.msra.mxu0 %v323
        %431 = vmatprep.subr.mxu0 0.0
        %432 = vmatpush1.msra.mxu0 %v324
        %433 = vmatprep.subr.mxu0 0.0
        %434 = vmatpush1.msra.mxu0 %v325
        %435 = vmatprep.subr.mxu0 0.0
        %436 = vmatpush1.msra.mxu0 %v326
        %437 = vmatprep.subr.mxu0 0.0
        %438 = vmatpush1.msra.mxu0 %v327
        %439 = vmatprep.subr.mxu0 0.0
        %440 = vmatpush1.msra.mxu0 %v328
        %441 = vmatprep.subr.mxu0 0.0
        %442 = vmatpush1.msra.mxu0 %v329
        %443 = vmatprep.subr.mxu0 0.0
        %444 = vmatpush1.msra.mxu0 %v330
        %445 = vmatprep.subr.mxu0 0.0
        %446 = vmatpush1.msra.mxu0 %v331
        %447 = vmatprep.subr.mxu0 0.0
        %448 = vmatpush1.msra.mxu0 %v332
        %449 = vmatprep.subr.mxu0 0.0
        %450 = vmatpush1.msra.mxu0 %v333
        %451 = vmatprep.subr.mxu0 0.0
        %452 = vmatpush1.msra.mxu0 %v334
        %453 = vmatprep.subr.mxu0 0.0
        %454 = vmatpush1.msra.mxu0 %v335
        %455 = vmatprep.subr.mxu0 0.0
        %456 = vmatpush1.msra.mxu0 %v336
        %457 = vmatprep.subr.mxu0 0.0
        %458 = vmatpush1.msra.mxu0 %v337
        %459 = vmatprep.subr.mxu0 0.0
        %460 = vmatpush1.msra.mxu0 %v338
        %461 = vmatprep.subr.mxu0 0.0
        %462 = vmatpush1.msra.mxu0 %v339
        %463 = vmatprep.subr.mxu0 0.0
        %464 = vmatpush1.msra.mxu0 %v340
        %465 = vmatprep.subr.mxu0 0.0
        %466 = vmatpush1.msra.mxu0 %v341
        %467 = vmatprep.subr.mxu0 0.0
        %468 = vmatpush1.msra.mxu0 %v342
        %469 = vmatprep.subr.mxu0 0.0
        %470 = vmatpush1.msra.mxu0 %v343
        %471 = vmatprep.subr.mxu0 0.0
        %472 = vmatpush1.msra.mxu0 %v344
        %473 = vmatprep.subr.mxu0 0.0
        %474 = vmatpush1.msra.mxu0 %v345
        %475 = vmatprep.subr.mxu0 0.0
        %476 = vmatpush1.msra.mxu0 %v346
        %477 = vmatprep.subr.mxu0 0.0
        %478 = vmatpush1.msra.mxu0 %v347
        %479 = vmatprep.subr.mxu0 0.0
        %480 = vmatpush1.msra.mxu0 %v348
        %481 = vmatprep.subr.mxu0 0.0
        %482 = vmatpush1.msra.mxu0 %v349
        %483 = vmatprep.subr.mxu0 0.0
        %484 = vmatpush1.msra.mxu0 %v350
        %485 = vmatprep.mubr.f32.mxu0 %v286
        %486 = vmatmul.mubr.f32.gmra.mrb[0].mxu0 %v285
        %v487 = vpop.f32.mrb[0].mxu0
        %v488 = vadd.f32 %v418, %v487
        %v489 = vpop.f32.mrb[0].mxu0
        %490 = vdwg.mxu0
        %v491 = vmul.f32 %v488, 5.656854
        %v492 = vld [vmem:[%s197] sm:$0xff]
        %v493 = vadd.f32 %v491, %v492
        %494 = vst [vmem:[%s189] sm:$0xff] %v493
        %s495 = sand.u32 %s99, 1
        %s496 = scalar_lea.sflag [#allocation4], %s495
        %s497 = sand.u32 %s99, 1
        %s498 = smul.addr %s497, 8
        %s499 = scalar_lea.vmem [#allocation5], %s498
        // Predicated region
        $region37: #{tpu_custom_call.1} parent=31 // pred_check
          %p500 = pneg %p109
        $region38: #{tpu_custom_call.1} parent=31 // pred_check_branch
          %502 = sbr.rel (%p500) target = $region40
        $region39: #{tpu_custom_call.1} parent=31 // pred_region
          %s504 = ssub.s32 128, 128
          %505 = vsyncadd %s496, %s504
          %s506 = smul.addr %s18, 128
          %s507 = scalar_lea.hbm %s3, %s506
          %s509 = sshll.u32 %s499, 4
          %s510 = int_to_ptr.vmem [resolvable:$true] %s509
          %512 = dma.vmem_to_hbm [thread:$0]  %s510, 128, %s507, %s496
        $region40: #{tpu_custom_call.1} parent=31 // pred_fallthru
          _
      $region32: #{tpu_custom_call.1} parent=5 // pred_fallthru
        _
      %p513 = scmp.le.s32.totalorder 2, %s13
      // Predicated region
      $region41: #{tpu_custom_call.1} parent=5 // pred_check
        %p514 = pneg %p513
      $region42: #{tpu_custom_call.1} parent=5 // pred_check_branch
        %516 = sbr.rel (%p514) target = $region44
      $region43: #{tpu_custom_call.1} parent=5 // pred_region
        %s517 = ssub.s32 %s13, 2
        // Predicated region
        $region45: #{tpu_custom_call.1} parent=43 // pred_check
          %p518 = pneg %p115
        $region46: #{tpu_custom_call.1} parent=43 // pred_check_branch
          %520 = sbr.rel (%p518) target = $region48
        $region47: #{tpu_custom_call.1} parent=43 // pred_region
          %s521 = sand.u32 %s100, 1
          %s522 = scalar_lea.sflag [#allocation4], %s521
          %s523 = sand.u32 %s100, 1
          %s524 = smul.addr %s523, 8
          %s525 = scalar_lea.vmem [#allocation5], %s524
          %526 = dma.done %s522, 128
        $region48: #{tpu_custom_call.1} parent=43 // pred_fallthru
          _
      $region44: #{tpu_custom_call.1} parent=5 // pred_fallthru
        _
    $region6: #{tpu_custom_call.1} parent=1 // loop_footer
      %s17 = sadd.s32 1, %s13
    $region7: #{tpu_custom_call.1} parent=1 // loop_footer_branch
      %12 = sbr.rel target = $region3
    $region8: #{tpu_custom_call.1} parent=1 // loop_exit
      _
    %527 = vsyncpa [#allocation3], 1
    %s528 = scalar_lea.sflag [#allocation3], 1
    %529 = vsyncpa %s528, 1
    %530 = vsyncpa [#allocation4], 1
    %s531 = scalar_lea.sflag [#allocation4], 1
    %532 = vsyncpa %s531, 1

</llo_original>
